<compile_context>
chip_gen: v7x
topology: tpu7x:2x2x1
jax: 0.10.0
libtpu: 0.0.40
codegen_flags: <defaults>
</compile_context>

<pallas_src>
import jax
import jax.numpy as jnp
from jax.experimental import pallas as pl
from jax.experimental.pallas import tpu as pltpu


def positional_embedding_kernel(w_ref, o_ref):
    # w_ref: (TR, E) weight tile; o_ref: (TB, TR, E) output tile.
    # TB is small & static -> unrolled plain tile copies, no broadcast temp.
    for t in range(o_ref.shape[0]):
        o_ref[t] = w_ref[...]


def _round_up(x, m):
    return ((x + m - 1) // m) * m


def _largest_divisor_leq(n, cap, multiple_of=1):
    """Largest d <= cap with d % multiple_of == 0 and n % d == 0, else None."""
    d = min(cap, n)
    d -= d % multiple_of
    while d >= multiple_of:
        if n % d == 0:
            return d
        d -= multiple_of
    return None


def _choose_tiles(B, L, E_pad, itemsize, *, row_target, batch_target, vmem_budget):
    """Pick (batch_tile, row_tile, padded_L) under a double-buffered VMEM budget."""
    # Sublane packing: f32 -> 8 rows, bf16 -> 16, int8/fp8 -> 32.
    sub = 8 * max(1, 4 // itemsize)

    # Batch tile: largest divisor of B not exceeding batch_target.
    tb = _largest_divisor_leq(B, min(batch_target, B)) or 1

    # Row cap from the VMEM budget: 2x input buffer + 2x output buffer.
    per_row_bytes = (1 + tb) * 2 * E_pad * itemsize
    row_cap = max(sub, (vmem_budget // per_row_bytes) // sub * sub)
    row_cap = min(row_cap, row_target)

    if L <= row_cap:
        return tb, L, L                     # full-length block: always layout-legal

    d = _largest_divisor_leq(L, row_cap, sub)
    if d is not None and d >= max(sub, row_cap // 8):
        return tb, d, L                     # decent exact divisor, no padding

    # No useful divisor (e.g. prime-ish L): pad L so big tiles still apply.
    row_tile = row_cap
    return tb, row_tile, _round_up(L, row_tile)


def positional_embedding(x, weight, *, row_target=1024, batch_target=8,
                         vmem_budget=10 << 20):
    """Pallas equivalent of PositionalEmbedding.forward(x).

    x:      (B, ...) — only the batch size is used (exactly like the module).
    weight: (L, E)   positional-embedding table (pe.weight).
    returns (B, L, E) == weight repeated along a new leading batch axis.
    """
    B = x.shape[0]
    L, E = weight.shape
    itemsize = jnp.dtype(weight.dtype).itemsize

    # Lane-dense stores: pad E to a multiple of 128 (sliced off at the end).
    # The common case E % 128 == 0 takes the zero-copy path.
    E_pad = _round_up(E, 128)

    tb, row_tile, L_pad = _choose_tiles(
        B, L, E_pad, itemsize,
        row_target=row_target, batch_target=batch_target, vmem_budget=vmem_budget)

    w = weight
    padded = (E_pad != E) or (L_pad != L)
    if padded:
        w = jnp.pad(weight, ((0, L_pad - L), (0, E_pad - E)))

    # Batch innermost -> the weight tile's block index (i, 0) is constant
    # across consecutive grid steps, so its HBM fetch is reused, not re-issued.
    grid = (L_pad // row_tile, B // tb)

    footprint = 2 * (1 + tb) * row_tile * E_pad * itemsize   # double-buffered in+out
    vmem_limit = None
    if footprint + (2 << 20) > (14 << 20):   # only if tight vs v5e's 16 MiB default
        vmem_limit = int(footprint + (2 << 20))

    out = pl.pallas_call(
        positional_embedding_kernel,
        out_shape=jax.ShapeDtypeStruct((B, L_pad, E_pad), weight.dtype),
        grid_spec=pltpu.PrefetchScalarGridSpec(
            num_scalar_prefetch=0,
            grid=grid,
            in_specs=[
                pl.BlockSpec((row_tile, E_pad), lambda i, b: (i, 0)),        # weight
            ],
            out_specs=pl.BlockSpec((tb, row_tile, E_pad), lambda i, b: (b, i, 0)),
        ),
        compiler_params=pltpu.CompilerParams(
            # Every output block is written exactly once -> both axes are
            # embarrassingly parallel (shards across the 2 TCs on v7x).
            dimension_semantics=("parallel", "parallel"),
            vmem_limit_bytes=vmem_limit,
        ),
        # Pure HBM-bandwidth op: tell XLA so it can overlap neighbors.
        cost_estimate=pl.CostEstimate(
            flops=0, transcendentals=0,
            bytes_accessed=(B + 1) * L_pad * E_pad * itemsize),
    )(w)

    if padded:
        out = out[:, :L, :E]
    return out


if __name__ == "__main__":
    key = jax.random.PRNGKey(0)
    k_w, k_x, k_w2, k_x2 = jax.random.split(key, 4)

    # --- Primary case: lane-dense E (multiple of 128), as in typical models.
    max_len, embed_size = 16, 128
    B, S = 2, 8
    weight = jax.random.normal(k_w, (max_len, embed_size), dtype=jnp.float32)  # N(0,1) init
    x = jax.random.randint(k_x, (B, S), 0, max_len, dtype=jnp.int32)           # only B is used

    out = jax.block_until_ready(positional_embedding(x, weight))
    ref = jnp.broadcast_to(weight[None, :, :], (B, max_len, embed_size))
    assert out.shape == (B, max_len, embed_size)
    assert out.dtype == weight.dtype
    assert jnp.array_equal(out, ref), "Pallas positional embedding mismatch vs reference"

    # --- Secondary case: exercises the padded (E % 128 != 0, awkward L) path.
    max_len2, embed_size2, B2 = 10, 48, 3
    weight2 = jax.random.normal(k_w2, (max_len2, embed_size2), dtype=jnp.float32)
    x2 = jax.random.randint(k_x2, (B2, 5), 0, max_len2, dtype=jnp.int32)

    out2 = jax.block_until_ready(positional_embedding(x2, weight2))
    ref2 = jnp.broadcast_to(weight2[None, :, :], (B2, max_len2, embed_size2))
    assert out2.shape == (B2, max_len2, embed_size2)
    assert jnp.array_equal(out2, ref2), "Pallas positional embedding (padded path) mismatch"

    print("KERNEL_OK")
</pallas_src>

<mosaic_0001>
module attributes {stable_mosaic.version = 11 : i64} {
  func.func @positional_embedding_kernel(%arg0: i32, %arg1: i32, %arg2: memref<16x128xf32, #tpu.memory_space<vmem>>, %arg3: memref<2x16x128xf32, #tpu.memory_space<vmem>>) attributes {dimension_semantics = [#tpu.dimension_semantics<parallel>, #tpu.dimension_semantics<parallel>], iteration_bounds = array<i64: 1, 1>, scalar_prefetch = 0 : i64, scratch_operands = 0 : i64, tpu.core_type = #tpu.core_type<tc>, window_params = [{transform_indices = @transform_0, window_bounds = array<i64: 16, 128>}, {transform_indices = @transform_1, window_bounds = array<i64: 2, 16, 128>}]} {
    %c0 = arith.constant 0 : index
    %c0_0 = arith.constant 0 : index
    %0 = vector.load %arg2[%c0, %c0_0] : memref<16x128xf32, #tpu.memory_space<vmem>>, vector<16x128xf32>
    %c0_1 = arith.constant 0 : index
    %c0_2 = arith.constant 0 : index
    %c0_3 = arith.constant 0 : index
    %1 = vector.load %arg3[%c0_1, %c0_2, %c0_3] : memref<2x16x128xf32, #tpu.memory_space<vmem>>, vector<1x16x128xf32>
    %2 = vector.shape_cast %1 : vector<1x16x128xf32> to vector<16x128xf32>
    %3 = vector.shape_cast %0 : vector<16x128xf32> to vector<1x16x128xf32>
    tpu.vector_store %arg3[%c0_1, %c0_2, %c0_3], %3 {strides = array<i32>} : memref<2x16x128xf32, #tpu.memory_space<vmem>>, vector<1x16x128xf32>,
    %c0_4 = arith.constant 0 : index
    %c0_5 = arith.constant 0 : index
    %4 = vector.load %arg2[%c0_4, %c0_5] : memref<16x128xf32, #tpu.memory_space<vmem>>, vector<16x128xf32>
    %c1 = arith.constant 1 : index
    %c0_6 = arith.constant 0 : index
    %c0_7 = arith.constant 0 : index
    %5 = vector.load %arg3[%c1, %c0_6, %c0_7] : memref<2x16x128xf32, #tpu.memory_space<vmem>>, vector<1x16x128xf32>
    %6 = vector.shape_cast %5 : vector<1x16x128xf32> to vector<16x128xf32>
    %7 = vector.shape_cast %4 : vector<16x128xf32> to vector<1x16x128xf32>
    tpu.vector_store %arg3[%c1, %c0_6, %c0_7], %7 {strides = array<i32>} : memref<2x16x128xf32, #tpu.memory_space<vmem>>, vector<1x16x128xf32>,
    return
  }
  func.func @transform_0(%arg0: i32, %arg1: i32) -> (i32, i32) {
    %c0_i32 = arith.constant 0 : i32
    %c0_i32_0 = arith.constant 0 : i32
    return %arg0, %c0_i32 : i32, i32
  }
  func.func @transform_1(%arg0: i32, %arg1: i32) -> (i32, i32, i32) {
    %c0_i32 = arith.constant 0 : i32
    %c0_i32_0 = arith.constant 0 : i32
    return %arg1, %arg0, %c0_i32 : i32, i32, i32
  }
}

</mosaic_0001>

<llo_original>
// kernel: tpu_custom_call.1
$region0: #{tpu_custom_call.1}
  #allocation0 [shape = 'u32[]', space=smem, size = 0x4, offset = 0x4, fixed_abs, tag = 'smem constant byte address 0x4 - core index']
  #allocation1 [shape = 'u32[144,128]{1,0:T(1,128)}', space=vmem, size = 0x12000, scoped, tag = 'internal scratch']
  %s0 = inlined_call_operand.hbm [shape: f32[16,128], index: 0, kind: input, shape index: {}]
  %s1 = inlined_call_operand.hbm [shape: f32[2,16,128], index: 1, kind: output, shape index: {}]
  %s2 = sld [smem:[#allocation0]]
  $region18: #{tpu_custom_call.1} parent=0
    _
  %s4 = ssub.s32 1, %s2
  %s5 = scalar_select 0, %s4, %s2
  $region1: #{tpu_custom_call.1} parent=0
    #allocation2 [shape = 'u8[8192]{0}', space=vmem, size = 0x2000, scoped, tag = 'input window, operand 0, single buffered']
    #allocation3 [shape = 's32[1]{0}', space=sflag, size = 0x4, scoped, tag = 'scoped memory for tpu_custom_call.1']
    #allocation4 [shape = 's32[1]{0}', space=sflag, size = 0x4, scoped, tag = 'scoped memory for tpu_custom_call.1']
    #allocation5 [shape = 'u8[16384]{0}', space=vmem, size = 0x4000, scoped, tag = 'output window, operand 0, single buffered']
    %6 = vsyncpa [#allocation3], 0
    %7 = vsyncpa [#allocation4], 0
    // Predicated region
    $region2: #{tpu_custom_call.1} parent=1 // pred_check
      _
    $region3: #{tpu_custom_call.1} parent=1 // pred_check_branch
      %9 = sbr.rel (0) target = $region5
    $region4: #{tpu_custom_call.1} parent=1 // pred_region
      %s11 = ssub.s32 256, 256
      %12 = vsyncadd [#allocation3], %s11
      %s13 = sshll.u32 [#allocation2], 4
      %s14 = int_to_ptr.vmem [resolvable:$true] %s13
      %19 = dma.hbm_to_vmem [thread:$0]  %s0, 256, %s14, [#allocation3], 128, 128, 8
    $region5: #{tpu_custom_call.1} parent=1 // pred_fallthru
      _
    // Predicated region
    $region6: #{tpu_custom_call.1} parent=1 // pred_check
      _
    $region7: #{tpu_custom_call.1} parent=1 // pred_check_branch
      %21 = sbr.rel (0) target = $region9
    $region8: #{tpu_custom_call.1} parent=1 // pred_region
      %22 = dma.done [#allocation3], 256
    $region9: #{tpu_custom_call.1} parent=1 // pred_fallthru
      _
    %v23 = vld [vmem:[#allocation2] sm:$0xff]
    %v24 = vld [vmem:[#allocation2 + $0x8] sm:$0xff]
    %25 = vst [vmem:[#allocation5] sm:$0xff] %v23
    %26 = vst [vmem:[#allocation5 + $0x8] sm:$0xff] %v24
    %v27 = vld [vmem:[#allocation2] sm:$0xff]
    %v28 = vld [vmem:[#allocation2 + $0x8] sm:$0xff]
    %s29 = scalar_lea.vmem [#allocation5], 16
    %30 = vst [vmem:[%s29] sm:$0xff] %v27
    %31 = vst [vmem:[%s29 + $0x8] sm:$0xff] %v28
    // Predicated region
    $region10: #{tpu_custom_call.1} parent=1 // pred_check
      _
    $region11: #{tpu_custom_call.1} parent=1 // pred_check_branch
      %33 = sbr.rel (0) target = $region13
    $region12: #{tpu_custom_call.1} parent=1 // pred_region
      %s35 = ssub.s32 512, 512
      %36 = vsyncadd [#allocation4], %s35
      %s37 = sshll.u32 [#allocation5], 4
      %s38 = int_to_ptr.vmem [resolvable:$true] %s37
      %43 = dma.vmem_to_hbm [thread:$0]  %s38, 512, %s1, [#allocation4], 128, 128, 8
    $region13: #{tpu_custom_call.1} parent=1 // pred_fallthru
      _
    // Predicated region
    $region14: #{tpu_custom_call.1} parent=1 // pred_check
      _
    $region15: #{tpu_custom_call.1} parent=1 // pred_check_branch
      %45 = sbr.rel (0) target = $region17
    $region16: #{tpu_custom_call.1} parent=1 // pred_region
      %46 = dma.done [#allocation4], 512
    $region17: #{tpu_custom_call.1} parent=1 // pred_fallthru
      _
    %47 = vsyncpa [#allocation3], 1
    %48 = vsyncpa [#allocation4], 1

</llo_original>
